<compile_context>
chip_gen: v5e
topology: v5e:2x2
jax: 0.10.0
libtpu: 0.0.40
codegen_flags: <defaults>
</compile_context>

<pallas_src>
import jax
import jax.numpy as jnp
from jax.experimental import pallas as pl
from jax.experimental.pallas import tpu as pltpu


def _round_up(v, m):
    return (v + m - 1) // m * m


def _net_tanh_kernel(x_ref, w1_ref, b1_ref, w2_ref, b2_ref, o_ref):
    # In-kernel cast to the MXU compute dtype (saves a wrapper-side HBM pass).
    x = x_ref[...].astype(w1_ref.dtype)
    # linear1: (TB, D_in) @ (D_in, Hp) on the MXU, f32 accumulate.
    h = jnp.dot(x, w1_ref[...], preferred_element_type=jnp.float32)
    # bias + tanh in f32 (portable to v5e which lacks bf16 VPU/EUP).
    h = jnp.tanh(h + b1_ref[...])
    # linear2: (TB, Hp) @ (Hp, D_out); MXU has huge slack here (mem-bound kernel).
    out = jnp.dot(h.astype(w2_ref.dtype), w2_ref[...],
                  preferred_element_type=jnp.float32)
    o_ref[...] = (out + b2_ref[...]).astype(o_ref.dtype)


def prepare_params(w1, b1, w2, b2, compute_dtype=jnp.bfloat16):
    """One-time parameter prep (call once at load time, not per forward).

    - transposes PyTorch (out_features, in_features) weights to (in, out)
    - zero-pads H up to lane width (128) -> lane-dense intermediate activation;
      padding is numerically exact (padded W1 columns / W2 rows are zero)
    - D_out is left UNPADDED (output block's last dim equals the full array dim)
    - weights cast to bf16 for the MXU; biases stay f32
    """
    H, D_in = w1.shape
    D_out = w2.shape[0]
    Hp = _round_up(H, 128)

    w1_t = jnp.zeros((D_in, Hp), compute_dtype).at[:, :H].set(
        w1.T.astype(compute_dtype))
    b1_r = jnp.zeros((1, Hp), jnp.float32).at[:, :H].set(b1.astype(jnp.float32))
    w2_t = jnp.zeros((Hp, D_out), compute_dtype).at[:H, :].set(
        w2.T.astype(compute_dtype))
    b2_r = b2.astype(jnp.float32).reshape(1, D_out)
    return w1_t, b1_r, w2_t, b2_r


def _choose_tb(B, D_in):
    """Batch tile: ~4 MiB per f32 x tile (double-buffered ~8 MiB), <= 4096 rows.

    Big tiles amortize the ~0.35 us/step grid overhead and keep the stream on
    the HBM roofline on all generations; for B <= tile, a single full-extent
    block (no (8,128) alignment requirement when block dim == array dim).
    """
    cap = max(512, (4 * 1024 * 1024) // (D_in * 4))
    tb = min(4096, cap)
    tb = max(512, (tb // 512) * 512)
    if B <= tb:
        return B
    return tb


def net_tanh_forward(x, w1_t, b1_r, w2_t, b2_r):
    """x: (B, D_in) float32 -> (B, D_out) float32."""
    B, D_in = x.shape
    Hp = w1_t.shape[1]
    D_out = w2_t.shape[1]

    TB = _choose_tb(B, D_in)
    n_blocks = pl.cdiv(B, TB)

    flops = 2 * B * (D_in * Hp + Hp * D_out)
    bytes_accessed = (B * D_in * 4            # x (f32, cast in-kernel)
                      + D_in * Hp * 2         # w1 (bf16)
                      + Hp * D_out * 2        # w2 (bf16)
                      + (Hp + D_out) * 4      # biases (f32)
                      + B * D_out * 4)        # out (f32, unpadded)

    out = pl.pallas_call(
        _net_tanh_kernel,
        out_shape=jax.ShapeDtypeStruct((B, D_out), jnp.float32),
        grid=(n_blocks,),
        in_specs=[
            pl.BlockSpec((TB, D_in), lambda i: (i, 0)),    # x: streamed over batch
            pl.BlockSpec((D_in, Hp), lambda i: (0, 0)),    # w1: VMEM-resident
            pl.BlockSpec((1, Hp),    lambda i: (0, 0)),    # b1: VMEM-resident
            pl.BlockSpec((Hp, D_out), lambda i: (0, 0)),   # w2: VMEM-resident
            pl.BlockSpec((1, D_out), lambda i: (0, 0)),    # b2: VMEM-resident
        ],
        out_specs=pl.BlockSpec((TB, D_out), lambda i: (i, 0)),
        compiler_params=pltpu.CompilerParams(
            dimension_semantics=("parallel",)),            # 2 TCs on v7x
        cost_estimate=pl.CostEstimate(
            flops=flops, transcendentals=B * Hp,
            bytes_accessed=bytes_accessed),
    )(x, w1_t, b1_r, w2_t, b2_r)

    return out


if __name__ == "__main__":
    # Small shapes consistent with the module: D_in=64, H=32, D_out=10, batch=8
    B, D_in, H, D_out = 8, 64, 32, 10

    key = jax.random.PRNGKey(0)
    kx, kw1, kb1, kw2, kb2 = jax.random.split(key, 5)

    # PyTorch-style uniform +/- 1/sqrt(fan_in) init.
    bound1 = 1.0 / (D_in ** 0.5)
    bound2 = 1.0 / (H ** 0.5)
    w1 = jax.random.uniform(kw1, (H, D_in), jnp.float32, -bound1, bound1)
    b1 = jax.random.uniform(kb1, (H,), jnp.float32, -bound1, bound1)
    w2 = jax.random.uniform(kw2, (D_out, H), jnp.float32, -bound2, bound2)
    b2 = jax.random.uniform(kb2, (D_out,), jnp.float32, -bound2, bound2)

    x = jax.random.normal(kx, (B, D_in), jnp.float32)

    # One-time parameter prep (transpose / pad / cast), then forward.
    params = prepare_params(w1, b1, w2, b2)
    out = net_tanh_forward(x, *params)
    jax.block_until_ready(out)

    # Reference check (plain JAX, f32). bf16 MXU path -> loose tolerance.
    ref = jnp.tanh(x @ w1.T + b1) @ w2.T + b2
    assert out.shape == (B, D_out)
    assert jnp.allclose(out, ref, atol=3e-2, rtol=3e-2)

    print("KERNEL_OK")
</pallas_src>

<mosaic_0001>
module attributes {stable_mosaic.version = 11 : i64} {
  func.func @_net_tanh_kernel(%arg0: i32, %arg1: memref<8x64xf32, #tpu.memory_space<vmem>>, %arg2: memref<64x128xbf16, #tpu.memory_space<vmem>>, %arg3: memref<1x128xf32, #tpu.memory_space<vmem>>, %arg4: memref<128x10xbf16, #tpu.memory_space<vmem>>, %arg5: memref<1x10xf32, #tpu.memory_space<vmem>>, %arg6: memref<8x10xf32, #tpu.memory_space<vmem>>) attributes {dimension_semantics = [#tpu.dimension_semantics<parallel>], iteration_bounds = array<i64: 1>, scalar_prefetch = 0 : i64, scratch_operands = 0 : i64, tpu.core_type = #tpu.core_type<tc>, window_params = [{transform_indices = @transform_0, window_bounds = array<i64: 8, 64>}, {pipeline_mode = #tpu.pipeline_mode<synchronous>, transform_indices = @transform_1, window_bounds = array<i64: 64, 128>}, {pipeline_mode = #tpu.pipeline_mode<synchronous>, transform_indices = @transform_2, window_bounds = array<i64: 1, 128>}, {pipeline_mode = #tpu.pipeline_mode<synchronous>, transform_indices = @transform_3, window_bounds = array<i64: 128, 10>}, {pipeline_mode = #tpu.pipeline_mode<synchronous>, transform_indices = @transform_4, window_bounds = array<i64: 1, 10>}, {transform_indices = @transform_5, window_bounds = array<i64: 8, 10>}]} {
    %c0 = arith.constant 0 : index
    %c0_0 = arith.constant 0 : index
    %0 = vector.load %arg1[%c0, %c0_0] : memref<8x64xf32, #tpu.memory_space<vmem>>, vector<8x64xf32>
    %1 = arith.truncf %0 : vector<8x64xf32> to vector<8x64xbf16>
    %c0_1 = arith.constant 0 : index
    %c0_2 = arith.constant 0 : index
    %2 = vector.load %arg2[%c0_1, %c0_2] : memref<64x128xbf16, #tpu.memory_space<vmem>>, vector<64x128xbf16>
    %cst = arith.constant dense<0.000000e+00> : vector<8x128xf32>
    %3 = tpu.matmul %1, %2, %cst {dimension_numbers = #tpu.dot_dimension_numbers<[1], [0], [0], [1], [0, 0, 1, 1], [], []>} : vector<8x64xbf16>, vector<64x128xbf16>, vector<8x128xf32> -> vector<8x128xf32>
    %c0_3 = arith.constant 0 : index
    %c0_4 = arith.constant 0 : index
    %4 = vector.load %arg3[%c0_3, %c0_4] : memref<1x128xf32, #tpu.memory_space<vmem>>, vector<1x128xf32>
    %5 = vector.broadcast %4 : vector<1x128xf32> to vector<8x128xf32>
    %6 = arith.addf %3, %5 : vector<8x128xf32>
    %7 = math.tanh %6 : vector<8x128xf32>
    %8 = arith.truncf %7 : vector<8x128xf32> to vector<8x128xbf16>
    %c0_5 = arith.constant 0 : index
    %c0_6 = arith.constant 0 : index
    %9 = vector.load %arg4[%c0_5, %c0_6] : memref<128x10xbf16, #tpu.memory_space<vmem>>, vector<128x10xbf16>
    %cst_7 = arith.constant dense<0.000000e+00> : vector<8x10xf32>
    %10 = tpu.matmul %8, %9, %cst_7 {dimension_numbers = #tpu.dot_dimension_numbers<[1], [0], [0], [1], [0, 0, 1, 1], [], []>} : vector<8x128xbf16>, vector<128x10xbf16>, vector<8x10xf32> -> vector<8x10xf32>
    %c0_8 = arith.constant 0 : index
    %c0_9 = arith.constant 0 : index
    %11 = vector.load %arg5[%c0_8, %c0_9] : memref<1x10xf32, #tpu.memory_space<vmem>>, vector<1x10xf32>
    %12 = vector.broadcast %11 : vector<1x10xf32> to vector<8x10xf32>
    %13 = arith.addf %10, %12 : vector<8x10xf32>
    %c0_10 = arith.constant 0 : index
    %c0_11 = arith.constant 0 : index
    %14 = vector.load %arg6[%c0_10, %c0_11] : memref<8x10xf32, #tpu.memory_space<vmem>>, vector<8x10xf32>
    tpu.vector_store %arg6[%c0_10, %c0_11], %13 {strides = array<i32>} : memref<8x10xf32, #tpu.memory_space<vmem>>, vector<8x10xf32>,
    return
  }
  func.func @transform_0(%arg0: i32) -> (i32, i32) {
    %c0_i32 = arith.constant 0 : i32
    %c0_i32_0 = arith.constant 0 : i32
    return %arg0, %c0_i32 : i32, i32
  }
  func.func @transform_1(%arg0: i32) -> (i32, i32) {
    %c0_i32 = arith.constant 0 : i32
    %c0_i32_0 = arith.constant 0 : i32
    %c0_i32_1 = arith.constant 0 : i32
    return %c0_i32, %c0_i32_0 : i32, i32
  }
  func.func @transform_2(%arg0: i32) -> (i32, i32) {
    %c0_i32 = arith.constant 0 : i32
    %c0_i32_0 = arith.constant 0 : i32
    %c0_i32_1 = arith.constant 0 : i32
    return %c0_i32, %c0_i32_0 : i32, i32
  }
  func.func @transform_3(%arg0: i32) -> (i32, i32) {
    %c0_i32 = arith.constant 0 : i32
    %c0_i32_0 = arith.constant 0 : i32
    %c0_i32_1 = arith.constant 0 : i32
    return %c0_i32, %c0_i32_0 : i32, i32
  }
  func.func @transform_4(%arg0: i32) -> (i32, i32) {
    %c0_i32 = arith.constant 0 : i32
    %c0_i32_0 = arith.constant 0 : i32
    %c0_i32_1 = arith.constant 0 : i32
    return %c0_i32, %c0_i32_0 : i32, i32
  }
  func.func @transform_5(%arg0: i32) -> (i32, i32) {
    %c0_i32 = arith.constant 0 : i32
    %c0_i32_0 = arith.constant 0 : i32
    return %arg0, %c0_i32 : i32, i32
  }
}

</mosaic_0001>

<llo_original>
// kernel: tpu_custom_call.1
$region0: #{tpu_custom_call.1}
  #allocation0 [shape = 'u32[]', space=smem, size = 0x4, offset = 0x4, fixed_abs, tag = 'smem constant byte address 0x4 - core index']
  #allocation1 [shape = 'u32[72,128]{1,0:T(1,128)}', space=vmem, size = 0x9000, scoped, tag = 'internal scratch']
  %s0 = inlined_call_operand.vmem [shape: f32[8,64], index: 0, kind: input, shape index: {}]
  %s1 = inlined_call_operand.vmem [shape: bf16[64,128], index: 1, kind: input, shape index: {}]
  %s2 = inlined_call_operand.vmem [shape: f32[1,128], index: 2, kind: input, shape index: {}]
  %s3 = inlined_call_operand.vmem [shape: bf16[128,10], index: 3, kind: input, shape index: {}]
  %s4 = inlined_call_operand.vmem [shape: f32[1,10], index: 4, kind: input, shape index: {}]
  %s5 = inlined_call_operand.hbm [shape: f32[8,10], index: 5, kind: output, shape index: {}]
  %s6 = sld [smem:[#allocation0]]
  $region30: #{tpu_custom_call.1} parent=0
    _
  %s8 = ssub.s32 1, %s6
  %s9 = scalar_select 0, %s8, %s6
  $region1: #{tpu_custom_call.1} parent=0
    #allocation2 [shape = 'u8[4096]{0}', space=vmem, size = 0x1000, scoped, tag = 'output window, operand 0, single buffered']
    #allocation3 [shape = 's32[1]{0}', space=sflag, size = 0x4, scoped, tag = 'scoped memory for tpu_custom_call.1']
    %10 = vsyncpa [#allocation3], 0
    // Predicated region
    $region2: #{tpu_custom_call.1} parent=1 // pred_check
      _
    $region3: #{tpu_custom_call.1} parent=1 // pred_check_branch
      %12 = sbr.rel (0) target = $region5
    $region4: #{tpu_custom_call.1} parent=1 // pred_region
      _
    $region5: #{tpu_custom_call.1} parent=1 // pred_fallthru
      _
    // Predicated region
    $region6: #{tpu_custom_call.1} parent=1 // pred_check
      _
    $region7: #{tpu_custom_call.1} parent=1 // pred_check_branch
      %14 = sbr.rel (0) target = $region9
    $region8: #{tpu_custom_call.1} parent=1 // pred_region
      _
    $region9: #{tpu_custom_call.1} parent=1 // pred_fallthru
      _
    // Predicated region
    $region10: #{tpu_custom_call.1} parent=1 // pred_check
      _
    $region11: #{tpu_custom_call.1} parent=1 // pred_check_branch
      %16 = sbr.rel (0) target = $region13
    $region12: #{tpu_custom_call.1} parent=1 // pred_region
      _
    $region13: #{tpu_custom_call.1} parent=1 // pred_fallthru
      _
    // Predicated region
    $region14: #{tpu_custom_call.1} parent=1 // pred_check
      _
    $region15: #{tpu_custom_call.1} parent=1 // pred_check_branch
      %18 = sbr.rel (0) target = $region17
    $region16: #{tpu_custom_call.1} parent=1 // pred_region
      _
    $region17: #{tpu_custom_call.1} parent=1 // pred_fallthru
      _
    // Predicated region
    $region18: #{tpu_custom_call.1} parent=1 // pred_check
      _
    $region19: #{tpu_custom_call.1} parent=1 // pred_check_branch
      %20 = sbr.rel (0) target = $region21
    $region20: #{tpu_custom_call.1} parent=1 // pred_region
      _
    $region21: #{tpu_custom_call.1} parent=1 // pred_fallthru
      _
    %v22 = vld [vmem:[%s0] sm:$0xff]
    %v23 = vpack.c.bf16 %v22, %v22
    %v24 = vld [vmem:[%s1] sm:$0xf]
    %v25 = vld [vmem:[%s1 + $0x4] sm:$0xf]
    %v26 = vld [vmem:[%s1 + $0x8] sm:$0xf]
    %v27 = vld [vmem:[%s1 + $0xc] sm:$0xf]
    %v28 = vld [vmem:[%s1 + $0x10] sm:$0xf]
    %v29 = vld [vmem:[%s1 + $0x14] sm:$0xf]
    %v30 = vld [vmem:[%s1 + $0x18] sm:$0xf]
    %v31 = vld [vmem:[%s1 + $0x1c] sm:$0xf]
    %v32 = vld [vmem:[%s2] sm:$0x1]
    %v34 = vperm.slane %v32, 0
    %v44 = vunpack.c.l.b16 %v24
    %v45 = vunpack.c.l.b16 %v25
    %v46 = vunpack.c.l.b16 %v26
    %v47 = vunpack.c.l.b16 %v27
    %v48 = vunpack.c.l.b16 %v28
    %v49 = vunpack.c.l.b16 %v29
    %v50 = vunpack.c.l.b16 %v30
    %v51 = vunpack.c.l.b16 %v31
    %v52 = vpack.c.b16 %v45, %v44
    %v53 = vpack.c.b16 %v47, %v46
    %v54 = vpack.c.b16 %v49, %v48
    %v55 = vpack.c.b16 %v51, %v50
    %vm60 = vcmask 523264
    %v62 = vsel %vm60, %v23, 0
    %64 = vmatpush.bf16.msra.mxu0 0
    %65 = vmatpush.bf16.msra.mxu0 0
    %66 = vmatpush.bf16.msra.mxu0 0
    %67 = vmatpush.bf16.msra.mxu0 0
    %68 = vmatpush.bf16.msra.mxu0 %v55
    %69 = vmatpush.bf16.msra.mxu0 %v54
    %70 = vmatpush.bf16.msra.mxu0 %v53
    %71 = vmatpush.bf16.msra.mxu0 %v52
    %72 = vmatmul.bf16.gmra.mxu0 %v62
    %v73 = vpop.f32.mrf.mxu0
    %v74 = vadd.f32 %v34, %v73
    %v75 = vpop.f32.mrf.mxu0
    %76 = vdwg.mxu0
    %v77 = vtanh.pop %v74
    %v78 = vpack.c.bf16 %v77, %v77
    %v79 = vld [vmem:[%s3] sm:$0xf]
    %v80 = vld [vmem:[%s3 + $0x4] sm:$0xf]
    %v81 = vld [vmem:[%s3 + $0x8] sm:$0xf]
    %v82 = vld [vmem:[%s3 + $0xc] sm:$0xf]
    %v83 = vld [vmem:[%s3 + $0x10] sm:$0xf]
    %v84 = vld [vmem:[%s3 + $0x14] sm:$0xf]
    %v85 = vld [vmem:[%s3 + $0x18] sm:$0xf]
    %v86 = vld [vmem:[%s3 + $0x1c] sm:$0xf]
    %v87 = vld [vmem:[%s3 + $0x20] sm:$0xf]
    %v88 = vld [vmem:[%s3 + $0x24] sm:$0xf]
    %v89 = vld [vmem:[%s3 + $0x28] sm:$0xf]
    %v90 = vld [vmem:[%s3 + $0x2c] sm:$0xf]
    %v91 = vld [vmem:[%s3 + $0x30] sm:$0xf]
    %v92 = vld [vmem:[%s3 + $0x34] sm:$0xf]
    %v93 = vld [vmem:[%s3 + $0x38] sm:$0xf]
    %v94 = vld [vmem:[%s3 + $0x3c] sm:$0xf]
    %v95 = vld [vmem:[%s4] sm:$0x1]
    %v97 = vperm.slane %v95, 0
    %v115 = vunpack.c.l.b16 %v79
    %v116 = vunpack.c.l.b16 %v80
    %v117 = vunpack.c.l.b16 %v81
    %v118 = vunpack.c.l.b16 %v82
    %v119 = vunpack.c.l.b16 %v83
    %v120 = vunpack.c.l.b16 %v84
    %v121 = vunpack.c.l.b16 %v85
    %v122 = vunpack.c.l.b16 %v86
    %v123 = vunpack.c.l.b16 %v87
    %v124 = vunpack.c.l.b16 %v88
    %v125 = vunpack.c.l.b16 %v89
    %v126 = vunpack.c.l.b16 %v90
    %v127 = vunpack.c.l.b16 %v91
    %v128 = vunpack.c.l.b16 %v92
    %v129 = vunpack.c.l.b16 %v93
    %v130 = vunpack.c.l.b16 %v94
    %v131 = vpack.c.b16 %v116, %v115
    %v132 = vpack.c.b16 %v118, %v117
    %v133 = vpack.c.b16 %v120, %v119
    %v134 = vpack.c.b16 %v122, %v121
    %v135 = vpack.c.b16 %v124, %v123
    %v136 = vpack.c.b16 %v126, %v125
    %v137 = vpack.c.b16 %v128, %v127
    %v138 = vpack.c.b16 %v130, %v129
    %147 = vmatpush.bf16.msra.mxu0 %v138
    %148 = vmatpush.bf16.msra.mxu0 %v137
    %149 = vmatpush.bf16.msra.mxu0 %v136
    %150 = vmatpush.bf16.msra.mxu0 %v135
    %151 = vmatpush.bf16.msra.mxu0 %v134
    %152 = vmatpush.bf16.msra.mxu0 %v133
    %153 = vmatpush.bf16.msra.mxu0 %v132
    %154 = vmatpush.bf16.msra.mxu0 %v131
    %155 = vmatmul.bf16.gmra.mxu0 %v78
    %v156 = vpop.f32.mrf.mxu0
    %v157 = vadd.f32 %v97, %v156
    %v158 = vpop.f32.mrf.mxu0
    %159 = vdwg.mxu0
    %vm160 = vcmask 80896
    %161 = vst.msk [vmem:[#allocation2] sm:$0xff] %vm160, %v157
    // Predicated region
    $region22: #{tpu_custom_call.1} parent=1 // pred_check
      _
    $region23: #{tpu_custom_call.1} parent=1 // pred_check_branch
      %163 = sbr.rel (0) target = $region25
    $region24: #{tpu_custom_call.1} parent=1 // pred_region
      %165 = vsyncadd [#allocation3], 0
      %s167 = sshll.u32 [#allocation2], 4
      %s168 = int_to_ptr.vmem [resolvable:$true] %s167
      %s169 = sshll.u32 %s5, 4
      %s170 = int_to_ptr.hbm [resolvable:$true] %s169
      %172 = dma.vmem_to_hbm [thread:$0]  %s168, 128, %s170, [#allocation3]
    $region25: #{tpu_custom_call.1} parent=1 // pred_fallthru
      _
    // Predicated region
    $region26: #{tpu_custom_call.1} parent=1 // pred_check
      _
    $region27: #{tpu_custom_call.1} parent=1 // pred_check_branch
      %174 = sbr.rel (0) target = $region29
    $region28: #{tpu_custom_call.1} parent=1 // pred_region
      %176 = dma.done [#allocation3], 128
    $region29: #{tpu_custom_call.1} parent=1 // pred_fallthru
      _
    %177 = vsyncpa [#allocation3], 1

</llo_original>
